<compile_context>
chip_gen: v5e
topology: v5e:2x2
jax: 0.10.0
libtpu: 0.0.40
codegen_flags: <defaults>
</compile_context>

<pallas_src>
import functools

import jax
import jax.numpy as jnp
from jax import lax
from jax.experimental import pallas as pl
from jax.experimental.pallas import tpu as pltpu


# ----------------------------------------------------------------------------
# Pallas kernel: full forward pass of the fixpoint model.
# ----------------------------------------------------------------------------
def _fixpoint_forward_kernel(x_ref, we_ref, beff_ref, wf_ref, wd_ref, bd_ref,
                             out_ref, *, num_iters: int):
    x = x_ref[...].astype(jnp.float32)

    # encoder_module(x) with the fused bias (beff = be + bf): `enc` is only
    # ever consumed as enc + bf, so the separate +be / +bf adds collapse into
    # one and the `be` input DMA disappears.
    enc_bf = (jnp.dot(x, we_ref[...], preferred_element_type=jnp.float32)
              + beff_ref[...])

    if num_iters <= 0:
        v_star = jnp.zeros_like(enc_bf)
    else:
        # v0 = zeros  =>  first step is just tanh(enc + bf): skip the dead matmul.
        v1 = jnp.tanh(enc_bf)

        def body(_, v):
            # Load Wf from VMEM inside the body rather than hoisting it into
            # vregs for the whole unrolled chain: vector loads are off the
            # serial dependency chain (effectively free) and this avoids
            # pinning 16 vregs across 29 unrolled iterations (spill risk).
            pre = (jnp.dot(v, wf_ref[...], preferred_element_type=jnp.float32)
                   + enc_bf)
            return jnp.tanh(pre)

        # Static trip count + tiny body: fully unroll so loop bookkeeping does
        # not sit on the serial dependency chain.
        # TODO(synk): explicit MXU weight-stationary driving
        # (pltpu.matmul_push_rhs / matmul_acc_lhs / matmul_pop) if the bundle
        # dump shows Wf re-pushed every iteration.
        v_star = lax.fori_loop(0, num_iters - 1, body, v1, unroll=True)

    # decoder_module(v_star)  (wd/bd were lane-padded at param-prep time so
    # this store is a full, unmasked lane-dense vst).
    out = (jnp.dot(v_star, wd_ref[...], preferred_element_type=jnp.float32)
           + bd_ref[...])
    out_ref[...] = out.astype(out_ref.dtype)


# ----------------------------------------------------------------------------
# One-time parameter preparation (hoisted out of the per-call hot path).
# ----------------------------------------------------------------------------
def prepare_params(params):
    """Fuse be+bf into one bias and lane-pad decoder columns to a multiple of
    128.  Returns (prepared_params, d_out)."""
    we, be, wf, bf, wd, bd = params
    beff = be + bf
    d_out = wd.shape[1]
    d_out_p = ((d_out + 127) // 128) * 128
    if d_out_p != d_out:
        # Zero-padding is exact: the extra output columns are independent and
        # discarded by the (optional) final slice.
        wd_p = jnp.pad(wd, ((0, 0), (0, d_out_p - d_out)))
        bd_p = jnp.pad(bd, ((0, 0), (0, d_out_p - d_out)))
    else:
        wd_p, bd_p = wd, bd
    return (we, beff, wf, wd_p, bd_p), d_out


def fixpoint_forward(x, prepared, d_out, *, num_iters: int = 30,
                     return_padded: bool = False):
    """Runs FixpointTrainer.forward(model, x) for the synthetic DEQ model.

    `prepared` comes from `prepare_params` (one-time per parameter set)."""
    we, beff, wf, wd_p, bd_p = prepared
    B = x.shape[0]
    d_out_p = wd_p.shape[1]

    vmem_spec = pl.BlockSpec(memory_space=pltpu.MemorySpace.VMEM)
    out_padded = pl.pallas_call(
        functools.partial(_fixpoint_forward_kernel, num_iters=num_iters),
        out_shape=jax.ShapeDtypeStruct((B, d_out_p), jnp.float32),
        in_specs=[vmem_spec] * 6,
        out_specs=vmem_spec,
    )(x, we, beff, wf, wd_p, bd_p)

    if return_padded or d_out_p == d_out:
        return out_padded
    return out_padded[:, :d_out]


# ----------------------------------------------------------------------------
# Pure-JAX reference (mirrors the PyTorch semantics) for a sanity check.
# ----------------------------------------------------------------------------
def fixpoint_forward_ref(x, params, *, num_iters: int = 30):
    we, be, wf, bf, wd, bd = params
    enc = x @ we + be                      # encoder_module
    v = jnp.zeros_like(enc)                # v = zeros_like(encoding)
    for _ in range(num_iters):             # root_finder = Picard iteration
        v = jnp.tanh(v @ wf + enc + bf)    # implicit_module(x, v)
    return v @ wd + bd                     # decoder_module


# ----------------------------------------------------------------------------
# Deterministic parameter init (nn.Linear-style uniform, contractive Wf).
# ----------------------------------------------------------------------------
def init_params(key, d_in, hidden, d_out):
    ks = jax.random.split(key, 6)

    def linear_init(kw, kb, fan_in, shape_w, shape_b):
        bound = 1.0 / jnp.sqrt(fan_in)
        w = jax.random.uniform(kw, shape_w, jnp.float32, -bound, bound)
        b = jax.random.uniform(kb, shape_b, jnp.float32, -bound, bound)
        return w, b

    we, be = linear_init(ks[0], ks[1], d_in, (d_in, hidden), (1, hidden))
    wf, bf = linear_init(ks[2], ks[3], hidden, (hidden, hidden), (1, hidden))
    # Scale implicit weight so tanh(v @ Wf + ...) is a contraction -> fixpoint exists.
    wf = 0.5 * wf
    wd, bd = linear_init(ks[4], ks[5], hidden, (hidden, d_out), (1, d_out))
    return we, be, wf, bf, wd, bd


if __name__ == "__main__":
    B, D_IN, HIDDEN, D_OUT = 8, 32, 128, 32
    NUM_ITERS = 30

    key = jax.random.PRNGKey(0)
    k_x, k_p = jax.random.split(key)
    x = jax.random.normal(k_x, (B, D_IN), jnp.float32)
    params = init_params(k_p, D_IN, HIDDEN, D_OUT)

    # One-time parameter prep (bias fusion + decoder lane padding), then run.
    prepared, d_out = prepare_params(params)
    out = fixpoint_forward(x, prepared, d_out, num_iters=NUM_ITERS)
    out = jax.block_until_ready(out)

    ref = fixpoint_forward_ref(x, params, num_iters=NUM_ITERS)
    assert out.shape == (B, D_OUT)
    assert jnp.allclose(out, ref, atol=1e-4, rtol=1e-4), "mismatch vs JAX reference"

    # TODO(synk): forward_train / loss_fn are abstract in the PyTorch module and
    # have no concrete semantics to translate.
    print("KERNEL_OK")
</pallas_src>

<mosaic_0001>
module attributes {stable_mosaic.version = 11 : i64} {
  func.func @_fixpoint_forward_kernel(%arg0: memref<8x32xf32, #tpu.memory_space<vmem>>, %arg1: memref<32x128xf32, #tpu.memory_space<vmem>>, %arg2: memref<1x128xf32, #tpu.memory_space<vmem>>, %arg3: memref<128x128xf32, #tpu.memory_space<vmem>>, %arg4: memref<128x128xf32, #tpu.memory_space<vmem>>, %arg5: memref<1x128xf32, #tpu.memory_space<vmem>>, %arg6: memref<8x128xf32, #tpu.memory_space<vmem>>) attributes {dimension_semantics = [], scalar_prefetch = 0 : i64, scratch_operands = 0 : i64, tpu.core_type = #tpu.core_type<tc>} {
    %c0 = arith.constant 0 : index
    %c0_0 = arith.constant 0 : index
    %0 = vector.load %arg0[%c0, %c0_0] : memref<8x32xf32, #tpu.memory_space<vmem>>, vector<8x32xf32>
    %c0_1 = arith.constant 0 : index
    %c0_2 = arith.constant 0 : index
    %1 = vector.load %arg1[%c0_1, %c0_2] : memref<32x128xf32, #tpu.memory_space<vmem>>, vector<32x128xf32>
    %cst = arith.constant dense<0.000000e+00> : vector<8x128xf32>
    %2 = tpu.matmul %0, %1, %cst {dimension_numbers = #tpu.dot_dimension_numbers<[1], [0], [0], [1], [0, 0, 1, 1], [], []>} : vector<8x32xf32>, vector<32x128xf32>, vector<8x128xf32> -> vector<8x128xf32>
    %c0_3 = arith.constant 0 : index
    %c0_4 = arith.constant 0 : index
    %3 = vector.load %arg2[%c0_3, %c0_4] : memref<1x128xf32, #tpu.memory_space<vmem>>, vector<1x128xf32>
    %4 = vector.broadcast %3 : vector<1x128xf32> to vector<8x128xf32>
    %5 = arith.addf %2, %4 : vector<8x128xf32>
    %6 = math.tanh %5 : vector<8x128xf32>
    %c0_i32 = arith.constant 0 : i32
    %c0_5 = arith.constant 0 : index
    %c0_6 = arith.constant 0 : index
    %7 = vector.load %arg3[%c0_5, %c0_6] : memref<128x128xf32, #tpu.memory_space<vmem>>, vector<128x128xf32>
    %cst_7 = arith.constant dense<0.000000e+00> : vector<8x128xf32>
    %8 = tpu.matmul %6, %7, %cst_7 {dimension_numbers = #tpu.dot_dimension_numbers<[1], [0], [0], [1], [0, 0, 1, 1], [], []>} : vector<8x128xf32>, vector<128x128xf32>, vector<8x128xf32> -> vector<8x128xf32>
    %9 = arith.addf %8, %5 : vector<8x128xf32>
    %10 = math.tanh %9 : vector<8x128xf32>
    %c1_i32 = arith.constant 1 : i32
    %c0_8 = arith.constant 0 : index
    %c0_9 = arith.constant 0 : index
    %11 = vector.load %arg3[%c0_8, %c0_9] : memref<128x128xf32, #tpu.memory_space<vmem>>, vector<128x128xf32>
    %cst_10 = arith.constant dense<0.000000e+00> : vector<8x128xf32>
    %12 = tpu.matmul %10, %11, %cst_10 {dimension_numbers = #tpu.dot_dimension_numbers<[1], [0], [0], [1], [0, 0, 1, 1], [], []>} : vector<8x128xf32>, vector<128x128xf32>, vector<8x128xf32> -> vector<8x128xf32>
    %13 = arith.addf %12, %5 : vector<8x128xf32>
    %14 = math.tanh %13 : vector<8x128xf32>
    %c2_i32 = arith.constant 2 : i32
    %c0_11 = arith.constant 0 : index
    %c0_12 = arith.constant 0 : index
    %15 = vector.load %arg3[%c0_11, %c0_12] : memref<128x128xf32, #tpu.memory_space<vmem>>, vector<128x128xf32>
    %cst_13 = arith.constant dense<0.000000e+00> : vector<8x128xf32>
    %16 = tpu.matmul %14, %15, %cst_13 {dimension_numbers = #tpu.dot_dimension_numbers<[1], [0], [0], [1], [0, 0, 1, 1], [], []>} : vector<8x128xf32>, vector<128x128xf32>, vector<8x128xf32> -> vector<8x128xf32>
    %17 = arith.addf %16, %5 : vector<8x128xf32>
    %18 = math.tanh %17 : vector<8x128xf32>
    %c3_i32 = arith.constant 3 : i32
    %c0_14 = arith.constant 0 : index
    %c0_15 = arith.constant 0 : index
    %19 = vector.load %arg3[%c0_14, %c0_15] : memref<128x128xf32, #tpu.memory_space<vmem>>, vector<128x128xf32>
    %cst_16 = arith.constant dense<0.000000e+00> : vector<8x128xf32>
    %20 = tpu.matmul %18, %19, %cst_16 {dimension_numbers = #tpu.dot_dimension_numbers<[1], [0], [0], [1], [0, 0, 1, 1], [], []>} : vector<8x128xf32>, vector<128x128xf32>, vector<8x128xf32> -> vector<8x128xf32>
    %21 = arith.addf %20, %5 : vector<8x128xf32>
    %22 = math.tanh %21 : vector<8x128xf32>
    %c4_i32 = arith.constant 4 : i32
    %c0_17 = arith.constant 0 : index
    %c0_18 = arith.constant 0 : index
    %23 = vector.load %arg3[%c0_17, %c0_18] : memref<128x128xf32, #tpu.memory_space<vmem>>, vector<128x128xf32>
    %cst_19 = arith.constant dense<0.000000e+00> : vector<8x128xf32>
    %24 = tpu.matmul %22, %23, %cst_19 {dimension_numbers = #tpu.dot_dimension_numbers<[1], [0], [0], [1], [0, 0, 1, 1], [], []>} : vector<8x128xf32>, vector<128x128xf32>, vector<8x128xf32> -> vector<8x128xf32>
    %25 = arith.addf %24, %5 : vector<8x128xf32>
    %26 = math.tanh %25 : vector<8x128xf32>
    %c5_i32 = arith.constant 5 : i32
    %c0_20 = arith.constant 0 : index
    %c0_21 = arith.constant 0 : index
    %27 = vector.load %arg3[%c0_20, %c0_21] : memref<128x128xf32, #tpu.memory_space<vmem>>, vector<128x128xf32>
    %cst_22 = arith.constant dense<0.000000e+00> : vector<8x128xf32>
    %28 = tpu.matmul %26, %27, %cst_22 {dimension_numbers = #tpu.dot_dimension_numbers<[1], [0], [0], [1], [0, 0, 1, 1], [], []>} : vector<8x128xf32>, vector<128x128xf32>, vector<8x128xf32> -> vector<8x128xf32>
    %29 = arith.addf %28, %5 : vector<8x128xf32>
    %30 = math.tanh %29 : vector<8x128xf32>
    %c6_i32 = arith.constant 6 : i32
    %c0_23 = arith.constant 0 : index
    %c0_24 = arith.constant 0 : index
    %31 = vector.load %arg3[%c0_23, %c0_24] : memref<128x128xf32, #tpu.memory_space<vmem>>, vector<128x128xf32>
    %cst_25 = arith.constant dense<0.000000e+00> : vector<8x128xf32>
    %32 = tpu.matmul %30, %31, %cst_25 {dimension_numbers = #tpu.dot_dimension_numbers<[1], [0], [0], [1], [0, 0, 1, 1], [], []>} : vector<8x128xf32>, vector<128x128xf32>, vector<8x128xf32> -> vector<8x128xf32>
    %33 = arith.addf %32, %5 : vector<8x128xf32>
    %34 = math.tanh %33 : vector<8x128xf32>
    %c7_i32 = arith.constant 7 : i32
    %c0_26 = arith.constant 0 : index
    %c0_27 = arith.constant 0 : index
    %35 = vector.load %arg3[%c0_26, %c0_27] : memref<128x128xf32, #tpu.memory_space<vmem>>, vector<128x128xf32>
    %cst_28 = arith.constant dense<0.000000e+00> : vector<8x128xf32>
    %36 = tpu.matmul %34, %35, %cst_28 {dimension_numbers = #tpu.dot_dimension_numbers<[1], [0], [0], [1], [0, 0, 1, 1], [], []>} : vector<8x128xf32>, vector<128x128xf32>, vector<8x128xf32> -> vector<8x128xf32>
    %37 = arith.addf %36, %5 : vector<8x128xf32>
    %38 = math.tanh %37 : vector<8x128xf32>
    %c8_i32 = arith.constant 8 : i32
    %c0_29 = arith.constant 0 : index
    %c0_30 = arith.constant 0 : index
    %39 = vector.load %arg3[%c0_29, %c0_30] : memref<128x128xf32, #tpu.memory_space<vmem>>, vector<128x128xf32>
    %cst_31 = arith.constant dense<0.000000e+00> : vector<8x128xf32>
    %40 = tpu.matmul %38, %39, %cst_31 {dimension_numbers = #tpu.dot_dimension_numbers<[1], [0], [0], [1], [0, 0, 1, 1], [], []>} : vector<8x128xf32>, vector<128x128xf32>, vector<8x128xf32> -> vector<8x128xf32>
    %41 = arith.addf %40, %5 : vector<8x128xf32>
    %42 = math.tanh %41 : vector<8x128xf32>
    %c9_i32 = arith.constant 9 : i32
    %c0_32 = arith.constant 0 : index
    %c0_33 = arith.constant 0 : index
    %43 = vector.load %arg3[%c0_32, %c0_33] : memref<128x128xf32, #tpu.memory_space<vmem>>, vector<128x128xf32>
    %cst_34 = arith.constant dense<0.000000e+00> : vector<8x128xf32>
    %44 = tpu.matmul %42, %43, %cst_34 {dimension_numbers = #tpu.dot_dimension_numbers<[1], [0], [0], [1], [0, 0, 1, 1], [], []>} : vector<8x128xf32>, vector<128x128xf32>, vector<8x128xf32> -> vector<8x128xf32>
    %45 = arith.addf %44, %5 : vector<8x128xf32>
    %46 = math.tanh %45 : vector<8x128xf32>
    %c10_i32 = arith.constant 10 : i32
    %c0_35 = arith.constant 0 : index
    %c0_36 = arith.constant 0 : index
    %47 = vector.load %arg3[%c0_35, %c0_36] : memref<128x128xf32, #tpu.memory_space<vmem>>, vector<128x128xf32>
    %cst_37 = arith.constant dense<0.000000e+00> : vector<8x128xf32>
    %48 = tpu.matmul %46, %47, %cst_37 {dimension_numbers = #tpu.dot_dimension_numbers<[1], [0], [0], [1], [0, 0, 1, 1], [], []>} : vector<8x128xf32>, vector<128x128xf32>, vector<8x128xf32> -> vector<8x128xf32>
    %49 = arith.addf %48, %5 : vector<8x128xf32>
    %50 = math.tanh %49 : vector<8x128xf32>
    %c11_i32 = arith.constant 11 : i32
    %c0_38 = arith.constant 0 : index
    %c0_39 = arith.constant 0 : index
    %51 = vector.load %arg3[%c0_38, %c0_39] : memref<128x128xf32, #tpu.memory_space<vmem>>, vector<128x128xf32>
    %cst_40 = arith.constant dense<0.000000e+00> : vector<8x128xf32>
    %52 = tpu.matmul %50, %51, %cst_40 {dimension_numbers = #tpu.dot_dimension_numbers<[1], [0], [0], [1], [0, 0, 1, 1], [], []>} : vector<8x128xf32>, vector<128x128xf32>, vector<8x128xf32> -> vector<8x128xf32>
    %53 = arith.addf %52, %5 : vector<8x128xf32>
    %54 = math.tanh %53 : vector<8x128xf32>
    %c12_i32 = arith.constant 12 : i32
    %c0_41 = arith.constant 0 : index
    %c0_42 = arith.constant 0 : index
    %55 = vector.load %arg3[%c0_41, %c0_42] : memref<128x128xf32, #tpu.memory_space<vmem>>, vector<128x128xf32>
    %cst_43 = arith.constant dense<0.000000e+00> : vector<8x128xf32>
    %56 = tpu.matmul %54, %55, %cst_43 {dimension_numbers = #tpu.dot_dimension_numbers<[1], [0], [0], [1], [0, 0, 1, 1], [], []>} : vector<8x128xf32>, vector<128x128xf32>, vector<8x128xf32> -> vector<8x128xf32>
    %57 = arith.addf %56, %5 : vector<8x128xf32>
    %58 = math.tanh %57 : vector<8x128xf32>
    %c13_i32 = arith.constant 13 : i32
    %c0_44 = arith.constant 0 : index
    %c0_45 = arith.constant 0 : index
    %59 = vector.load %arg3[%c0_44, %c0_45] : memref<128x128xf32, #tpu.memory_space<vmem>>, vector<128x128xf32>
    %cst_46 = arith.constant dense<0.000000e+00> : vector<8x128xf32>
    %60 = tpu.matmul %58, %59, %cst_46 {dimension_numbers = #tpu.dot_dimension_numbers<[1], [0], [0], [1], [0, 0, 1, 1], [], []>} : vector<8x128xf32>, vector<128x128xf32>, vector<8x128xf32> -> vector<8x128xf32>
    %61 = arith.addf %60, %5 : vector<8x128xf32>
    %62 = math.tanh %61 : vector<8x128xf32>
    %c14_i32 = arith.constant 14 : i32
    %c0_47 = arith.constant 0 : index
    %c0_48 = arith.constant 0 : index
    %63 = vector.load %arg3[%c0_47, %c0_48] : memref<128x128xf32, #tpu.memory_space<vmem>>, vector<128x128xf32>
    %cst_49 = arith.constant dense<0.000000e+00> : vector<8x128xf32>
    %64 = tpu.matmul %62, %63, %cst_49 {dimension_numbers = #tpu.dot_dimension_numbers<[1], [0], [0], [1], [0, 0, 1, 1], [], []>} : vector<8x128xf32>, vector<128x128xf32>, vector<8x128xf32> -> vector<8x128xf32>
    %65 = arith.addf %64, %5 : vector<8x128xf32>
    %66 = math.tanh %65 : vector<8x128xf32>
    %c15_i32 = arith.constant 15 : i32
    %c0_50 = arith.constant 0 : index
    %c0_51 = arith.constant 0 : index
    %67 = vector.load %arg3[%c0_50, %c0_51] : memref<128x128xf32, #tpu.memory_space<vmem>>, vector<128x128xf32>
    %cst_52 = arith.constant dense<0.000000e+00> : vector<8x128xf32>
    %68 = tpu.matmul %66, %67, %cst_52 {dimension_numbers = #tpu.dot_dimension_numbers<[1], [0], [0], [1], [0, 0, 1, 1], [], []>} : vector<8x128xf32>, vector<128x128xf32>, vector<8x128xf32> -> vector<8x128xf32>
    %69 = arith.addf %68, %5 : vector<8x128xf32>
    %70 = math.tanh %69 : vector<8x128xf32>
    %c16_i32 = arith.constant 16 : i32
    %c0_53 = arith.constant 0 : index
    %c0_54 = arith.constant 0 : index
    %71 = vector.load %arg3[%c0_53, %c0_54] : memref<128x128xf32, #tpu.memory_space<vmem>>, vector<128x128xf32>
    %cst_55 = arith.constant dense<0.000000e+00> : vector<8x128xf32>
    %72 = tpu.matmul %70, %71, %cst_55 {dimension_numbers = #tpu.dot_dimension_numbers<[1], [0], [0], [1], [0, 0, 1, 1], [], []>} : vector<8x128xf32>, vector<128x128xf32>, vector<8x128xf32> -> vector<8x128xf32>
    %73 = arith.addf %72, %5 : vector<8x128xf32>
    %74 = math.tanh %73 : vector<8x128xf32>
    %c17_i32 = arith.constant 17 : i32
    %c0_56 = arith.constant 0 : index
    %c0_57 = arith.constant 0 : index
    %75 = vector.load %arg3[%c0_56, %c0_57] : memref<128x128xf32, #tpu.memory_space<vmem>>, vector<128x128xf32>
    %cst_58 = arith.constant dense<0.000000e+00> : vector<8x128xf32>
    %76 = tpu.matmul %74, %75, %cst_58 {dimension_numbers = #tpu.dot_dimension_numbers<[1], [0], [0], [1], [0, 0, 1, 1], [], []>} : vector<8x128xf32>, vector<128x128xf32>, vector<8x128xf32> -> vector<8x128xf32>
    %77 = arith.addf %76, %5 : vector<8x128xf32>
    %78 = math.tanh %77 : vector<8x128xf32>
    %c18_i32 = arith.constant 18 : i32
    %c0_59 = arith.constant 0 : index
    %c0_60 = arith.constant 0 : index
    %79 = vector.load %arg3[%c0_59, %c0_60] : memref<128x128xf32, #tpu.memory_space<vmem>>, vector<128x128xf32>
    %cst_61 = arith.constant dense<0.000000e+00> : vector<8x128xf32>
    %80 = tpu.matmul %78, %79, %cst_61 {dimension_numbers = #tpu.dot_dimension_numbers<[1], [0], [0], [1], [0, 0, 1, 1], [], []>} : vector<8x128xf32>, vector<128x128xf32>, vector<8x128xf32> -> vector<8x128xf32>
    %81 = arith.addf %80, %5 : vector<8x128xf32>
    %82 = math.tanh %81 : vector<8x128xf32>
    %c19_i32 = arith.constant 19 : i32
    %c0_62 = arith.constant 0 : index
    %c0_63 = arith.constant 0 : index
    %83 = vector.load %arg3[%c0_62, %c0_63] : memref<128x128xf32, #tpu.memory_space<vmem>>, vector<128x128xf32>
    %cst_64 = arith.constant dense<0.000000e+00> : vector<8x128xf32>
    %84 = tpu.matmul %82, %83, %cst_64 {dimension_numbers = #tpu.dot_dimension_numbers<[1], [0], [0], [1], [0, 0, 1, 1], [], []>} : vector<8x128xf32>, vector<128x128xf32>, vector<8x128xf32> -> vector<8x128xf32>
    %85 = arith.addf %84, %5 : vector<8x128xf32>
    %86 = math.tanh %85 : vector<8x128xf32>
    %c20_i32 = arith.constant 20 : i32
    %c0_65 = arith.constant 0 : index
    %c0_66 = arith.constant 0 : index
    %87 = vector.load %arg3[%c0_65, %c0_66] : memref<128x128xf32, #tpu.memory_space<vmem>>, vector<128x128xf32>
    %cst_67 = arith.constant dense<0.000000e+00> : vector<8x128xf32>
    %88 = tpu.matmul %86, %87, %cst_67 {dimension_numbers = #tpu.dot_dimension_numbers<[1], [0], [0], [1], [0, 0, 1, 1], [], []>} : vector<8x128xf32>, vector<128x128xf32>, vector<8x128xf32> -> vector<8x128xf32>
    %89 = arith.addf %88, %5 : vector<8x128xf32>
    %90 = math.tanh %89 : vector<8x128xf32>
    %c21_i32 = arith.constant 21 : i32
    %c0_68 = arith.constant 0 : index
    %c0_69 = arith.constant 0 : index
    %91 = vector.load %arg3[%c0_68, %c0_69] : memref<128x128xf32, #tpu.memory_space<vmem>>, vector<128x128xf32>
    %cst_70 = arith.constant dense<0.000000e+00> : vector<8x128xf32>
    %92 = tpu.matmul %90, %91, %cst_70 {dimension_numbers = #tpu.dot_dimension_numbers<[1], [0], [0], [1], [0, 0, 1, 1], [], []>} : vector<8x128xf32>, vector<128x128xf32>, vector<8x128xf32> -> vector<8x128xf32>
    %93 = arith.addf %92, %5 : vector<8x128xf32>
    %94 = math.tanh %93 : vector<8x128xf32>
    %c22_i32 = arith.constant 22 : i32
    %c0_71 = arith.constant 0 : index
    %c0_72 = arith.constant 0 : index
    %95 = vector.load %arg3[%c0_71, %c0_72] : memref<128x128xf32, #tpu.memory_space<vmem>>, vector<128x128xf32>
    %cst_73 = arith.constant dense<0.000000e+00> : vector<8x128xf32>
    %96 = tpu.matmul %94, %95, %cst_73 {dimension_numbers = #tpu.dot_dimension_numbers<[1], [0], [0], [1], [0, 0, 1, 1], [], []>} : vector<8x128xf32>, vector<128x128xf32>, vector<8x128xf32> -> vector<8x128xf32>
    %97 = arith.addf %96, %5 : vector<8x128xf32>
    %98 = math.tanh %97 : vector<8x128xf32>
    %c23_i32 = arith.constant 23 : i32
    %c0_74 = arith.constant 0 : index
    %c0_75 = arith.constant 0 : index
    %99 = vector.load %arg3[%c0_74, %c0_75] : memref<128x128xf32, #tpu.memory_space<vmem>>, vector<128x128xf32>
    %cst_76 = arith.constant dense<0.000000e+00> : vector<8x128xf32>
    %100 = tpu.matmul %98, %99, %cst_76 {dimension_numbers = #tpu.dot_dimension_numbers<[1], [0], [0], [1], [0, 0, 1, 1], [], []>} : vector<8x128xf32>, vector<128x128xf32>, vector<8x128xf32> -> vector<8x128xf32>
    %101 = arith.addf %100, %5 : vector<8x128xf32>
    %102 = math.tanh %101 : vector<8x128xf32>
    %c24_i32 = arith.constant 24 : i32
    %c0_77 = arith.constant 0 : index
    %c0_78 = arith.constant 0 : index
    %103 = vector.load %arg3[%c0_77, %c0_78] : memref<128x128xf32, #tpu.memory_space<vmem>>, vector<128x128xf32>
    %cst_79 = arith.constant dense<0.000000e+00> : vector<8x128xf32>
    %104 = tpu.matmul %102, %103, %cst_79 {dimension_numbers = #tpu.dot_dimension_numbers<[1], [0], [0], [1], [0, 0, 1, 1], [], []>} : vector<8x128xf32>, vector<128x128xf32>, vector<8x128xf32> -> vector<8x128xf32>
    %105 = arith.addf %104, %5 : vector<8x128xf32>
    %106 = math.tanh %105 : vector<8x128xf32>
    %c25_i32 = arith.constant 25 : i32
    %c0_80 = arith.constant 0 : index
    %c0_81 = arith.constant 0 : index
    %107 = vector.load %arg3[%c0_80, %c0_81] : memref<128x128xf32, #tpu.memory_space<vmem>>, vector<128x128xf32>
    %cst_82 = arith.constant dense<0.000000e+00> : vector<8x128xf32>
    %108 = tpu.matmul %106, %107, %cst_82 {dimension_numbers = #tpu.dot_dimension_numbers<[1], [0], [0], [1], [0, 0, 1, 1], [], []>} : vector<8x128xf32>, vector<128x128xf32>, vector<8x128xf32> -> vector<8x128xf32>
    %109 = arith.addf %108, %5 : vector<8x128xf32>
    %110 = math.tanh %109 : vector<8x128xf32>
    %c26_i32 = arith.constant 26 : i32
    %c0_83 = arith.constant 0 : index
    %c0_84 = arith.constant 0 : index
    %111 = vector.load %arg3[%c0_83, %c0_84] : memref<128x128xf32, #tpu.memory_space<vmem>>, vector<128x128xf32>
    %cst_85 = arith.constant dense<0.000000e+00> : vector<8x128xf32>
    %112 = tpu.matmul %110, %111, %cst_85 {dimension_numbers = #tpu.dot_dimension_numbers<[1], [0], [0], [1], [0, 0, 1, 1], [], []>} : vector<8x128xf32>, vector<128x128xf32>, vector<8x128xf32> -> vector<8x128xf32>
    %113 = arith.addf %112, %5 : vector<8x128xf32>
    %114 = math.tanh %113 : vector<8x128xf32>
    %c27_i32 = arith.constant 27 : i32
    %c0_86 = arith.constant 0 : index
    %c0_87 = arith.constant 0 : index
    %115 = vector.load %arg3[%c0_86, %c0_87] : memref<128x128xf32, #tpu.memory_space<vmem>>, vector<128x128xf32>
    %cst_88 = arith.constant dense<0.000000e+00> : vector<8x128xf32>
    %116 = tpu.matmul %114, %115, %cst_88 {dimension_numbers = #tpu.dot_dimension_numbers<[1], [0], [0], [1], [0, 0, 1, 1], [], []>} : vector<8x128xf32>, vector<128x128xf32>, vector<8x128xf32> -> vector<8x128xf32>
    %117 = arith.addf %116, %5 : vector<8x128xf32>
    %118 = math.tanh %117 : vector<8x128xf32>
    %c28_i32 = arith.constant 28 : i32
    %c0_89 = arith.constant 0 : index
    %c0_90 = arith.constant 0 : index
    %119 = vector.load %arg3[%c0_89, %c0_90] : memref<128x128xf32, #tpu.memory_space<vmem>>, vector<128x128xf32>
    %cst_91 = arith.constant dense<0.000000e+00> : vector<8x128xf32>
    %120 = tpu.matmul %118, %119, %cst_91 {dimension_numbers = #tpu.dot_dimension_numbers<[1], [0], [0], [1], [0, 0, 1, 1], [], []>} : vector<8x128xf32>, vector<128x128xf32>, vector<8x128xf32> -> vector<8x128xf32>
    %121 = arith.addf %120, %5 : vector<8x128xf32>
    %122 = math.tanh %121 : vector<8x128xf32>
    %c0_92 = arith.constant 0 : index
    %c0_93 = arith.constant 0 : index
    %123 = vector.load %arg4[%c0_92, %c0_93] : memref<128x128xf32, #tpu.memory_space<vmem>>, vector<128x128xf32>
    %cst_94 = arith.constant dense<0.000000e+00> : vector<8x128xf32>
    %124 = tpu.matmul %122, %123, %cst_94 {dimension_numbers = #tpu.dot_dimension_numbers<[1], [0], [0], [1], [0, 0, 1, 1], [], []>} : vector<8x128xf32>, vector<128x128xf32>, vector<8x128xf32> -> vector<8x128xf32>
    %c0_95 = arith.constant 0 : index
    %c0_96 = arith.constant 0 : index
    %125 = vector.load %arg5[%c0_95, %c0_96] : memref<1x128xf32, #tpu.memory_space<vmem>>, vector<1x128xf32>
    %126 = vector.broadcast %125 : vector<1x128xf32> to vector<8x128xf32>
    %127 = arith.addf %124, %126 : vector<8x128xf32>
    %c0_97 = arith.constant 0 : index
    %c0_98 = arith.constant 0 : index
    %128 = vector.load %arg6[%c0_97, %c0_98] : memref<8x128xf32, #tpu.memory_space<vmem>>, vector<8x128xf32>
    tpu.vector_store %arg6[%c0_97, %c0_98], %127 {strides = array<i32>} : memref<8x128xf32, #tpu.memory_space<vmem>>, vector<8x128xf32>,
    return
  }
}

</mosaic_0001>

<llo_original>
// kernel: tpu_custom_call.1
$region0: #{tpu_custom_call.1}
  #allocation0 [shape = 'u32[]', space=smem, size = 0x4, offset = 0x4, fixed_abs, tag = 'smem constant byte address 0x4 - core index']
  #allocation1 [shape = 'u32[72,128]{1,0:T(1,128)}', space=vmem, size = 0x9000, scoped, tag = 'internal scratch']
  %s0 = inlined_call_operand.hbm [shape: f32[8,32], index: 0, kind: input, shape index: {}]
  %s1 = inlined_call_operand.hbm [shape: f32[32,128], index: 1, kind: input, shape index: {}]
  %s2 = inlined_call_operand.vmem [shape: f32[1,128], index: 2, kind: input, shape index: {}]
  %s3 = inlined_call_operand.hbm [shape: f32[128,128], index: 3, kind: input, shape index: {}]
  %s4 = inlined_call_operand.hbm [shape: f32[128,128], index: 4, kind: input, shape index: {}]
  %s5 = inlined_call_operand.vmem [shape: f32[1,128], index: 5, kind: input, shape index: {}]
  %s6 = inlined_call_operand.hbm [shape: f32[8,128], index: 6, kind: output, shape index: {}]
  %s7 = sld [smem:[#allocation0]]
  $region50: #{tpu_custom_call.1} parent=0
    _
  %s9 = ssub.s32 1, %s7
  %s10 = scalar_select 0, %s9, %s7
  $region1: #{tpu_custom_call.1} parent=0
    #allocation2 [shape = 'u8[4096]{0}', space=vmem, size = 0x1000, scoped, tag = 'input window, operand 0, single buffered']
    #allocation3 [shape = 's32[1]{0}', space=sflag, size = 0x4, scoped, tag = 'scoped memory for tpu_custom_call.1']
    #allocation4 [shape = 's32[1]{0}', space=sflag, size = 0x4, scoped, tag = 'scoped memory for tpu_custom_call.1']
    #allocation5 [shape = 'u8[16384]{0}', space=vmem, size = 0x4000, scoped, tag = 'input window, operand 1, single buffered']
    #allocation6 [shape = 's32[1]{0}', space=sflag, size = 0x4, scoped, tag = 'scoped memory for tpu_custom_call.1']
    #allocation7 [shape = 'u8[65536]{0}', space=vmem, size = 0x10000, scoped, tag = 'input window, operand 3, single buffered']
    #allocation8 [shape = 'u8[65536]{0}', space=vmem, size = 0x10000, scoped, tag = 'input window, operand 4, single buffered']
    #allocation9 [shape = 's32[1]{0}', space=sflag, size = 0x4, scoped, tag = 'scoped memory for tpu_custom_call.1']
    #allocation10 [shape = 'u8[4096]{0}', space=vmem, size = 0x1000, scoped, tag = 'output window, operand 0, single buffered']
    %11 = vsyncpa [#allocation3], 0
    %12 = vsyncpa [#allocation6], 0
    %13 = vsyncpa [#allocation9], 0
    %14 = vsyncpa [#allocation4], 0
    // Predicated region
    $region2: #{tpu_custom_call.1} parent=1 // pred_check
      _
    $region3: #{tpu_custom_call.1} parent=1 // pred_check_branch
      %16 = sbr.rel (0) target = $region5
    $region4: #{tpu_custom_call.1} parent=1 // pred_region
      %18 = vsyncadd [#allocation3], 0
      %s20 = sshll.u32 %s0, 4
      %s21 = int_to_ptr.hbm [resolvable:$true] %s20
      %s22 = sshll.u32 [#allocation2], 4
      %s23 = int_to_ptr.vmem [resolvable:$true] %s22
      %25 = dma.hbm_to_vmem [thread:$0]  %s21, 128, %s23, [#allocation3]
    $region5: #{tpu_custom_call.1} parent=1 // pred_fallthru
      _
    // Predicated region
    $region6: #{tpu_custom_call.1} parent=1 // pred_check
      _
    $region7: #{tpu_custom_call.1} parent=1 // pred_check_branch
      %27 = sbr.rel (0) target = $region9
    $region8: #{tpu_custom_call.1} parent=1 // pred_region
      %29 = vsyncadd [#allocation6], 0
      %s30 = sshll.u32 %s1, 4
      %s31 = int_to_ptr.hbm [resolvable:$true] %s30
      %s32 = sshll.u32 [#allocation5], 4
      %s33 = int_to_ptr.vmem [resolvable:$true] %s32
      %38 = dma.hbm_to_vmem [thread:$0]  %s31, 512, %s33, [#allocation6], 128, 128, 8
    $region9: #{tpu_custom_call.1} parent=1 // pred_fallthru
      _
    // Predicated region
    $region10: #{tpu_custom_call.1} parent=1 // pred_check
      _
    $region11: #{tpu_custom_call.1} parent=1 // pred_check_branch
      %40 = sbr.rel (0) target = $region13
    $region12: #{tpu_custom_call.1} parent=1 // pred_region
      _
    $region13: #{tpu_custom_call.1} parent=1 // pred_fallthru
      _
    // Predicated region
    $region14: #{tpu_custom_call.1} parent=1 // pred_check
      _
    $region15: #{tpu_custom_call.1} parent=1 // pred_check_branch
      %42 = sbr.rel (0) target = $region17
    $region16: #{tpu_custom_call.1} parent=1 // pred_region
      %44 = vsyncadd [#allocation6], 0
      %s45 = sshll.u32 %s3, 4
      %s46 = int_to_ptr.hbm [resolvable:$true] %s45
      %s47 = sshll.u32 [#allocation7], 4
      %s48 = int_to_ptr.vmem [resolvable:$true] %s47
      %53 = dma.hbm_to_vmem [thread:$0]  %s46, 2048, %s48, [#allocation6], 128, 128, 8
    $region17: #{tpu_custom_call.1} parent=1 // pred_fallthru
      _
    // Predicated region
    $region18: #{tpu_custom_call.1} parent=1 // pred_check
      _
    $region19: #{tpu_custom_call.1} parent=1 // pred_check_branch
      %55 = sbr.rel (0) target = $region21
    $region20: #{tpu_custom_call.1} parent=1 // pred_region
      %57 = vsyncadd [#allocation9], 0
      %s58 = sshll.u32 %s4, 4
      %s59 = int_to_ptr.hbm [resolvable:$true] %s58
      %s60 = sshll.u32 [#allocation8], 4
      %s61 = int_to_ptr.vmem [resolvable:$true] %s60
      %66 = dma.hbm_to_vmem [thread:$0]  %s59, 2048, %s61, [#allocation9], 128, 128, 8
    $region21: #{tpu_custom_call.1} parent=1 // pred_fallthru
      _
    // Predicated region
    $region22: #{tpu_custom_call.1} parent=1 // pred_check
      _
    $region23: #{tpu_custom_call.1} parent=1 // pred_check_branch
      %68 = sbr.rel (0) target = $region25
    $region24: #{tpu_custom_call.1} parent=1 // pred_region
      _
    $region25: #{tpu_custom_call.1} parent=1 // pred_fallthru
      _
    // Predicated region
    $region26: #{tpu_custom_call.1} parent=1 // pred_check
      _
    $region27: #{tpu_custom_call.1} parent=1 // pred_check_branch
      %70 = sbr.rel (0) target = $region29
    $region28: #{tpu_custom_call.1} parent=1 // pred_region
      %72 = dma.done [#allocation3], 128
    $region29: #{tpu_custom_call.1} parent=1 // pred_fallthru
      _
    // Predicated region
    $region30: #{tpu_custom_call.1} parent=1 // pred_check
      _
    $region31: #{tpu_custom_call.1} parent=1 // pred_check_branch
      %74 = sbr.rel (0) target = $region33
    $region32: #{tpu_custom_call.1} parent=1 // pred_region
      %76 = dma.done [#allocation6], 512
    $region33: #{tpu_custom_call.1} parent=1 // pred_fallthru
      _
    // Predicated region
    $region34: #{tpu_custom_call.1} parent=1 // pred_check
      _
    $region35: #{tpu_custom_call.1} parent=1 // pred_check_branch
      %78 = sbr.rel (0) target = $region37
    $region36: #{tpu_custom_call.1} parent=1 // pred_region
      %80 = dma.done [#allocation6], 2048
    $region37: #{tpu_custom_call.1} parent=1 // pred_fallthru
      _
    // Predicated region
    $region38: #{tpu_custom_call.1} parent=1 // pred_check
      _
    $region39: #{tpu_custom_call.1} parent=1 // pred_check_branch
      %82 = sbr.rel (0) target = $region41
    $region40: #{tpu_custom_call.1} parent=1 // pred_region
      %84 = dma.done [#allocation9], 2048
    $region41: #{tpu_custom_call.1} parent=1 // pred_fallthru
      _
    %v85 = vld [vmem:[#allocation2] sm:$0xff]
    %v86 = vld [vmem:[#allocation5] sm:$0xff]
    %v87 = vld [vmem:[#allocation5 + $0x8] sm:$0xff]
    %v88 = vld [vmem:[#allocation5 + $0x10] sm:$0xff]
    %v89 = vld [vmem:[#allocation5 + $0x18] sm:$0xff]
    %v90 = vld [vmem:[%s2] sm:$0x1]
    %v92 = vperm.slane %v90, 0
    %vm94 = vcmask 261120
    %v96 = vsel %vm94, %v85, 0
    %98 = vmatpush.msra.mxu0 0.0
    %99 = vmatpush.msra.mxu0 0.0
    %100 = vmatpush.msra.mxu0 0.0
    %101 = vmatpush.msra.mxu0 0.0
    %102 = vmatpush.msra.mxu0 0.0
    %103 = vmatpush.msra.mxu0 0.0
    %104 = vmatpush.msra.mxu0 0.0
    %105 = vmatpush.msra.mxu0 0.0
    %106 = vmatpush.msra.mxu0 0.0
    %107 = vmatpush.msra.mxu0 0.0
    %108 = vmatpush.msra.mxu0 0.0
    %109 = vmatpush.msra.mxu0 0.0
    %110 = vmatpush.msra.mxu0 %v89
    %111 = vmatpush.msra.mxu0 %v88
    %112 = vmatpush.msra.mxu0 %v87
    %113 = vmatpush.msra.mxu0 %v86
    %114 = vmatmul.f32.gmra.mxu0 %v96
    %v115 = vpop.f32.mrf.mxu0
    %v116 = vadd.f32 %v92, %v115
    %117 = vdwg.mxu0
    %v118 = vtanh.pop %v116
    %v119 = vld [vmem:[#allocation7] sm:$0xff]
    %v120 = vld [vmem:[#allocation7 + $0x8] sm:$0xff]
    %v121 = vld [vmem:[#allocation7 + $0x10] sm:$0xff]
    %v122 = vld [vmem:[#allocation7 + $0x18] sm:$0xff]
    %v123 = vld [vmem:[#allocation7 + $0x20] sm:$0xff]
    %v124 = vld [vmem:[#allocation7 + $0x28] sm:$0xff]
    %v125 = vld [vmem:[#allocation7 + $0x30] sm:$0xff]
    %v126 = vld [vmem:[#allocation7 + $0x38] sm:$0xff]
    %v127 = vld [vmem:[#allocation7 + $0x40] sm:$0xff]
    %v128 = vld [vmem:[#allocation7 + $0x48] sm:$0xff]
    %v129 = vld [vmem:[#allocation7 + $0x50] sm:$0xff]
    %v130 = vld [vmem:[#allocation7 + $0x58] sm:$0xff]
    %v131 = vld [vmem:[#allocation7 + $0x60] sm:$0xff]
    %v132 = vld [vmem:[#allocation7 + $0x68] sm:$0xff]
    %v133 = vld [vmem:[#allocation7 + $0x70] sm:$0xff]
    %v134 = vld [vmem:[#allocation7 + $0x78] sm:$0xff]
    %135 = vmatpush.msra.mxu0 %v134
    %136 = vmatpush.msra.mxu0 %v133
    %137 = vmatpush.msra.mxu0 %v132
    %138 = vmatpush.msra.mxu0 %v131
    %139 = vmatpush.msra.mxu0 %v130
    %140 = vmatpush.msra.mxu0 %v129
    %141 = vmatpush.msra.mxu0 %v128
    %142 = vmatpush.msra.mxu0 %v127
    %143 = vmatpush.msra.mxu0 %v126
    %144 = vmatpush.msra.mxu0 %v125
    %145 = vmatpush.msra.mxu0 %v124
    %146 = vmatpush.msra.mxu0 %v123
    %147 = vmatpush.msra.mxu0 %v122
    %148 = vmatpush.msra.mxu0 %v121
    %149 = vmatpush.msra.mxu0 %v120
    %150 = vmatpush.msra.mxu0 %v119
    %151 = vmatmul.f32.gmra.mxu0 %v118
    %v152 = vpop.f32.mrf.mxu0
    %v153 = vadd.f32 %v116, %v152
    %154 = vdwg.mxu0
    %v155 = vtanh.pop %v153
    %156 = vmatpush.msra.mxu0 %v134
    %157 = vmatpush.msra.mxu0 %v133
    %158 = vmatpush.msra.mxu0 %v132
    %159 = vmatpush.msra.mxu0 %v131
    %160 = vmatpush.msra.mxu0 %v130
    %161 = vmatpush.msra.mxu0 %v129
    %162 = vmatpush.msra.mxu0 %v128
    %163 = vmatpush.msra.mxu0 %v127
    %164 = vmatpush.msra.mxu0 %v126
    %165 = vmatpush.msra.mxu0 %v125
    %166 = vmatpush.msra.mxu0 %v124
    %167 = vmatpush.msra.mxu0 %v123
    %168 = vmatpush.msra.mxu0 %v122
    %169 = vmatpush.msra.mxu0 %v121
    %170 = vmatpush.msra.mxu0 %v120
    %171 = vmatpush.msra.mxu0 %v119
    %172 = vmatmul.f32.gmra.mxu0 %v155
    %v173 = vpop.f32.mrf.mxu0
    %v174 = vadd.f32 %v116, %v173
    %175 = vdwg.mxu0
    %v176 = vtanh.pop %v174
    %177 = vmatpush.msra.mxu0 %v134
    %178 = vmatpush.msra.mxu0 %v133
    %179 = vmatpush.msra.mxu0 %v132
    %180 = vmatpush.msra.mxu0 %v131
    %181 = vmatpush.msra.mxu0 %v130
    %182 = vmatpush.msra.mxu0 %v129
    %183 = vmatpush.msra.mxu0 %v128
    %184 = vmatpush.msra.mxu0 %v127
    %185 = vmatpush.msra.mxu0 %v126
    %186 = vmatpush.msra.mxu0 %v125
    %187 = vmatpush.msra.mxu0 %v124
    %188 = vmatpush.msra.mxu0 %v123
    %189 = vmatpush.msra.mxu0 %v122
    %190 = vmatpush.msra.mxu0 %v121
    %191 = vmatpush.msra.mxu0 %v120
    %192 = vmatpush.msra.mxu0 %v119
    %193 = vmatmul.f32.gmra.mxu0 %v176
    %v194 = vpop.f32.mrf.mxu0
    %v195 = vadd.f32 %v116, %v194
    %196 = vdwg.mxu0
    %v197 = vtanh.pop %v195
    %198 = vmatpush.msra.mxu0 %v134
    %199 = vmatpush.msra.mxu0 %v133
    %200 = vmatpush.msra.mxu0 %v132
    %201 = vmatpush.msra.mxu0 %v131
    %202 = vmatpush.msra.mxu0 %v130
    %203 = vmatpush.msra.mxu0 %v129
    %204 = vmatpush.msra.mxu0 %v128
    %205 = vmatpush.msra.mxu0 %v127
    %206 = vmatpush.msra.mxu0 %v126
    %207 = vmatpush.msra.mxu0 %v125
    %208 = vmatpush.msra.mxu0 %v124
    %209 = vmatpush.msra.mxu0 %v123
    %210 = vmatpush.msra.mxu0 %v122
    %211 = vmatpush.msra.mxu0 %v121
    %212 = vmatpush.msra.mxu0 %v120
    %213 = vmatpush.msra.mxu0 %v119
    %214 = vmatmul.f32.gmra.mxu0 %v197
    %v215 = vpop.f32.mrf.mxu0
    %v216 = vadd.f32 %v116, %v215
    %217 = vdwg.mxu0
    %v218 = vtanh.pop %v216
    %219 = vmatpush.msra.mxu0 %v134
    %220 = vmatpush.msra.mxu0 %v133
    %221 = vmatpush.msra.mxu0 %v132
    %222 = vmatpush.msra.mxu0 %v131
    %223 = vmatpush.msra.mxu0 %v130
    %224 = vmatpush.msra.mxu0 %v129
    %225 = vmatpush.msra.mxu0 %v128
    %226 = vmatpush.msra.mxu0 %v127
    %227 = vmatpush.msra.mxu0 %v126
    %228 = vmatpush.msra.mxu0 %v125
    %229 = vmatpush.msra.mxu0 %v124
    %230 = vmatpush.msra.mxu0 %v123
    %231 = vmatpush.msra.mxu0 %v122
    %232 = vmatpush.msra.mxu0 %v121
    %233 = vmatpush.msra.mxu0 %v120
    %234 = vmatpush.msra.mxu0 %v119
    %235 = vmatmul.f32.gmra.mxu0 %v218
    %v236 = vpop.f32.mrf.mxu0
    %v237 = vadd.f32 %v116, %v236
    %238 = vdwg.mxu0
    %v239 = vtanh.pop %v237
    %240 = vmatpush.msra.mxu0 %v134
    %241 = vmatpush.msra.mxu0 %v133
    %242 = vmatpush.msra.mxu0 %v132
    %243 = vmatpush.msra.mxu0 %v131
    %244 = vmatpush.msra.mxu0 %v130
    %245 = vmatpush.msra.mxu0 %v129
    %246 = vmatpush.msra.mxu0 %v128
    %247 = vmatpush.msra.mxu0 %v127
    %248 = vmatpush.msra.mxu0 %v126
    %249 = vmatpush.msra.mxu0 %v125
    %250 = vmatpush.msra.mxu0 %v124
    %251 = vmatpush.msra.mxu0 %v123
    %252 = vmatpush.msra.mxu0 %v122
    %253 = vmatpush.msra.mxu0 %v121
    %254 = vmatpush.msra.mxu0 %v120
    %255 = vmatpush.msra.mxu0 %v119
    %256 = vmatmul.f32.gmra.mxu0 %v239
    %v257 = vpop.f32.mrf.mxu0
    %v258 = vadd.f32 %v116, %v257
    %259 = vdwg.mxu0
    %v260 = vtanh.pop %v258
    %261 = vmatpush.msra.mxu0 %v134
    %262 = vmatpush.msra.mxu0 %v133
    %263 = vmatpush.msra.mxu0 %v132
    %264 = vmatpush.msra.mxu0 %v131
    %265 = vmatpush.msra.mxu0 %v130
    %266 = vmatpush.msra.mxu0 %v129
    %267 = vmatpush.msra.mxu0 %v128
    %268 = vmatpush.msra.mxu0 %v127
    %269 = vmatpush.msra.mxu0 %v126
    %270 = vmatpush.msra.mxu0 %v125
    %271 = vmatpush.msra.mxu0 %v124
    %272 = vmatpush.msra.mxu0 %v123
    %273 = vmatpush.msra.mxu0 %v122
    %274 = vmatpush.msra.mxu0 %v121
    %275 = vmatpush.msra.mxu0 %v120
    %276 = vmatpush.msra.mxu0 %v119
    %277 = vmatmul.f32.gmra.mxu0 %v260
    %v278 = vpop.f32.mrf.mxu0
    %v279 = vadd.f32 %v116, %v278
    %280 = vdwg.mxu0
    %v281 = vtanh.pop %v279
    %282 = vmatpush.msra.mxu0 %v134
    %283 = vmatpush.msra.mxu0 %v133
    %284 = vmatpush.msra.mxu0 %v132
    %285 = vmatpush.msra.mxu0 %v131
    %286 = vmatpush.msra.mxu0 %v130
    %287 = vmatpush.msra.mxu0 %v129
    %288 = vmatpush.msra.mxu0 %v128
    %289 = vmatpush.msra.mxu0 %v127
    %290 = vmatpush.msra.mxu0 %v126
    %291 = vmatpush.msra.mxu0 %v125
    %292 = vmatpush.msra.mxu0 %v124
    %293 = vmatpush.msra.mxu0 %v123
    %294 = vmatpush.msra.mxu0 %v122
    %295 = vmatpush.msra.mxu0 %v121
    %296 = vmatpush.msra.mxu0 %v120
    %297 = vmatpush.msra.mxu0 %v119
    %298 = vmatmul.f32.gmra.mxu0 %v281
    %v299 = vpop.f32.mrf.mxu0
    %v300 = vadd.f32 %v116, %v299
    %301 = vdwg.mxu0
    %v302 = vtanh.pop %v300
    %303 = vmatpush.msra.mxu0 %v134
    %304 = vmatpush.msra.mxu0 %v133
    %305 = vmatpush.msra.mxu0 %v132
    %306 = vmatpush.msra.mxu0 %v131
    %307 = vmatpush.msra.mxu0 %v130
    %308 = vmatpush.msra.mxu0 %v129
    %309 = vmatpush.msra.mxu0 %v128
    %310 = vmatpush.msra.mxu0 %v127
    %311 = vmatpush.msra.mxu0 %v126
    %312 = vmatpush.msra.mxu0 %v125
    %313 = vmatpush.msra.mxu0 %v124
    %314 = vmatpush.msra.mxu0 %v123
    %315 = vmatpush.msra.mxu0 %v122
    %316 = vmatpush.msra.mxu0 %v121
    %317 = vmatpush.msra.mxu0 %v120
    %318 = vmatpush.msra.mxu0 %v119
    %319 = vmatmul.f32.gmra.mxu0 %v302
    %v320 = vpop.f32.mrf.mxu0
    %v321 = vadd.f32 %v116, %v320
    %322 = vdwg.mxu0
    %v323 = vtanh.pop %v321
    %324 = vmatpush.msra.mxu0 %v134
    %325 = vmatpush.msra.mxu0 %v133
    %326 = vmatpush.msra.mxu0 %v132
    %327 = vmatpush.msra.mxu0 %v131
    %328 = vmatpush.msra.mxu0 %v130
    %329 = vmatpush.msra.mxu0 %v129
    %330 = vmatpush.msra.mxu0 %v128
    %331 = vmatpush.msra.mxu0 %v127
    %332 = vmatpush.msra.mxu0 %v126
    %333 = vmatpush.msra.mxu0 %v125
    %334 = vmatpush.msra.mxu0 %v124
    %335 = vmatpush.msra.mxu0 %v123
    %336 = vmatpush.msra.mxu0 %v122
    %337 = vmatpush.msra.mxu0 %v121
    %338 = vmatpush.msra.mxu0 %v120
    %339 = vmatpush.msra.mxu0 %v119
    %340 = vmatmul.f32.gmra.mxu0 %v323
    %v341 = vpop.f32.mrf.mxu0
    %v342 = vadd.f32 %v116, %v341
    %343 = vdwg.mxu0
    %v344 = vtanh.pop %v342
    %345 = vmatpush.msra.mxu0 %v134
    %346 = vmatpush.msra.mxu0 %v133
    %347 = vmatpush.msra.mxu0 %v132
    %348 = vmatpush.msra.mxu0 %v131
    %349 = vmatpush.msra.mxu0 %v130
    %350 = vmatpush.msra.mxu0 %v129
    %351 = vmatpush.msra.mxu0 %v128
    %352 = vmatpush.msra.mxu0 %v127
    %353 = vmatpush.msra.mxu0 %v126
    %354 = vmatpush.msra.mxu0 %v125
    %355 = vmatpush.msra.mxu0 %v124
    %356 = vmatpush.msra.mxu0 %v123
    %357 = vmatpush.msra.mxu0 %v122
    %358 = vmatpush.msra.mxu0 %v121
    %359 = vmatpush.msra.mxu0 %v120
    %360 = vmatpush.msra.mxu0 %v119
    %361 = vmatmul.f32.gmra.mxu0 %v344
    %v362 = vpop.f32.mrf.mxu0
    %v363 = vadd.f32 %v116, %v362
    %364 = vdwg.mxu0
    %v365 = vtanh.pop %v363
    %366 = vmatpush.msra.mxu0 %v134
    %367 = vmatpush.msra.mxu0 %v133
    %368 = vmatpush.msra.mxu0 %v132
    %369 = vmatpush.msra.mxu0 %v131
    %370 = vmatpush.msra.mxu0 %v130
    %371 = vmatpush.msra.mxu0 %v129
    %372 = vmatpush.msra.mxu0 %v128
    %373 = vmatpush.msra.mxu0 %v127
    %374 = vmatpush.msra.mxu0 %v126
    %375 = vmatpush.msra.mxu0 %v125
    %376 = vmatpush.msra.mxu0 %v124
    %377 = vmatpush.msra.mxu0 %v123
    %378 = vmatpush.msra.mxu0 %v122
    %379 = vmatpush.msra.mxu0 %v121
    %380 = vmatpush.msra.mxu0 %v120
    %381 = vmatpush.msra.mxu0 %v119
    %382 = vmatmul.f32.gmra.mxu0 %v365
    %v383 = vpop.f32.mrf.mxu0
    %v384 = vadd.f32 %v116, %v383
    %385 = vdwg.mxu0
    %v386 = vtanh.pop %v384
    %387 = vmatpush.msra.mxu0 %v134
    %388 = vmatpush.msra.mxu0 %v133
    %389 = vmatpush.msra.mxu0 %v132
    %390 = vmatpush.msra.mxu0 %v131
    %391 = vmatpush.msra.mxu0 %v130
    %392 = vmatpush.msra.mxu0 %v129
    %393 = vmatpush.msra.mxu0 %v128
    %394 = vmatpush.msra.mxu0 %v127
    %395 = vmatpush.msra.mxu0 %v126
    %396 = vmatpush.msra.mxu0 %v125
    %397 = vmatpush.msra.mxu0 %v124
    %398 = vmatpush.msra.mxu0 %v123
    %399 = vmatpush.msra.mxu0 %v122
    %400 = vmatpush.msra.mxu0 %v121
    %401 = vmatpush.msra.mxu0 %v120
    %402 = vmatpush.msra.mxu0 %v119
    %403 = vmatmul.f32.gmra.mxu0 %v386
    %v404 = vpop.f32.mrf.mxu0
    %v405 = vadd.f32 %v116, %v404
    %406 = vdwg.mxu0
    %v407 = vtanh.pop %v405
    %408 = vmatpush.msra.mxu0 %v134
    %409 = vmatpush.msra.mxu0 %v133
    %410 = vmatpush.msra.mxu0 %v132
    %411 = vmatpush.msra.mxu0 %v131
    %412 = vmatpush.msra.mxu0 %v130
    %413 = vmatpush.msra.mxu0 %v129
    %414 = vmatpush.msra.mxu0 %v128
    %415 = vmatpush.msra.mxu0 %v127
    %416 = vmatpush.msra.mxu0 %v126
    %417 = vmatpush.msra.mxu0 %v125
    %418 = vmatpush.msra.mxu0 %v124
    %419 = vmatpush.msra.mxu0 %v123
    %420 = vmatpush.msra.mxu0 %v122
    %421 = vmatpush.msra.mxu0 %v121
    %422 = vmatpush.msra.mxu0 %v120
    %423 = vmatpush.msra.mxu0 %v119
    %424 = vmatmul.f32.gmra.mxu0 %v407
    %v425 = vpop.f32.mrf.mxu0
    %v426 = vadd.f32 %v116, %v425
    %427 = vdwg.mxu0
    %v428 = vtanh.pop %v426
    %429 = vmatpush.msra.mxu0 %v134
    %430 = vmatpush.msra.mxu0 %v133
    %431 = vmatpush.msra.mxu0 %v132
    %432 = vmatpush.msra.mxu0 %v131
    %433 = vmatpush.msra.mxu0 %v130
    %434 = vmatpush.msra.mxu0 %v129
    %435 = vmatpush.msra.mxu0 %v128
    %436 = vmatpush.msra.mxu0 %v127
    %437 = vmatpush.msra.mxu0 %v126
    %438 = vmatpush.msra.mxu0 %v125
    %439 = vmatpush.msra.mxu0 %v124
    %440 = vmatpush.msra.mxu0 %v123
    %441 = vmatpush.msra.mxu0 %v122
    %442 = vmatpush.msra.mxu0 %v121
    %443 = vmatpush.msra.mxu0 %v120
    %444 = vmatpush.msra.mxu0 %v119
    %445 = vmatmul.f32.gmra.mxu0 %v428
    %v446 = vpop.f32.mrf.mxu0
    %v447 = vadd.f32 %v116, %v446
    %448 = vdwg.mxu0
    %v449 = vtanh.pop %v447
    %450 = vmatpush.msra.mxu0 %v134
    %451 = vmatpush.msra.mxu0 %v133
    %452 = vmatpush.msra.mxu0 %v132
    %453 = vmatpush.msra.mxu0 %v131
    %454 = vmatpush.msra.mxu0 %v130
    %455 = vmatpush.msra.mxu0 %v129
    %456 = vmatpush.msra.mxu0 %v128
    %457 = vmatpush.msra.mxu0 %v127
    %458 = vmatpush.msra.mxu0 %v126
    %459 = vmatpush.msra.mxu0 %v125
    %460 = vmatpush.msra.mxu0 %v124
    %461 = vmatpush.msra.mxu0 %v123
    %462 = vmatpush.msra.mxu0 %v122
    %463 = vmatpush.msra.mxu0 %v121
    %464 = vmatpush.msra.mxu0 %v120
    %465 = vmatpush.msra.mxu0 %v119
    %466 = vmatmul.f32.gmra.mxu0 %v449
    %v467 = vpop.f32.mrf.mxu0
    %v468 = vadd.f32 %v116, %v467
    %469 = vdwg.mxu0
    %v470 = vtanh.pop %v468
    %471 = vmatpush.msra.mxu0 %v134
    %472 = vmatpush.msra.mxu0 %v133
    %473 = vmatpush.msra.mxu0 %v132
    %474 = vmatpush.msra.mxu0 %v131
    %475 = vmatpush.msra.mxu0 %v130
    %476 = vmatpush.msra.mxu0 %v129
    %477 = vmatpush.msra.mxu0 %v128
    %478 = vmatpush.msra.mxu0 %v127
    %479 = vmatpush.msra.mxu0 %v126
    %480 = vmatpush.msra.mxu0 %v125
    %481 = vmatpush.msra.mxu0 %v124
    %482 = vmatpush.msra.mxu0 %v123
    %483 = vmatpush.msra.mxu0 %v122
    %484 = vmatpush.msra.mxu0 %v121
    %485 = vmatpush.msra.mxu0 %v120
    %486 = vmatpush.msra.mxu0 %v119
    %487 = vmatmul.f32.gmra.mxu0 %v470
    %v488 = vpop.f32.mrf.mxu0
    %v489 = vadd.f32 %v116, %v488
    %490 = vdwg.mxu0
    %v491 = vtanh.pop %v489
    %492 = vmatpush.msra.mxu0 %v134
    %493 = vmatpush.msra.mxu0 %v133
    %494 = vmatpush.msra.mxu0 %v132
    %495 = vmatpush.msra.mxu0 %v131
    %496 = vmatpush.msra.mxu0 %v130
    %497 = vmatpush.msra.mxu0 %v129
    %498 = vmatpush.msra.mxu0 %v128
    %499 = vmatpush.msra.mxu0 %v127
    %500 = vmatpush.msra.mxu0 %v126
    %501 = vmatpush.msra.mxu0 %v125
    %502 = vmatpush.msra.mxu0 %v124
    %503 = vmatpush.msra.mxu0 %v123
    %504 = vmatpush.msra.mxu0 %v122
    %505 = vmatpush.msra.mxu0 %v121
    %506 = vmatpush.msra.mxu0 %v120
    %507 = vmatpush.msra.mxu0 %v119
    %508 = vmatmul.f32.gmra.mxu0 %v491
    %v509 = vpop.f32.mrf.mxu0
    %v510 = vadd.f32 %v116, %v509
    %511 = vdwg.mxu0
    %v512 = vtanh.pop %v510
    %513 = vmatpush.msra.mxu0 %v134
    %514 = vmatpush.msra.mxu0 %v133
    %515 = vmatpush.msra.mxu0 %v132
    %516 = vmatpush.msra.mxu0 %v131
    %517 = vmatpush.msra.mxu0 %v130
    %518 = vmatpush.msra.mxu0 %v129
    %519 = vmatpush.msra.mxu0 %v128
    %520 = vmatpush.msra.mxu0 %v127
    %521 = vmatpush.msra.mxu0 %v126
    %522 = vmatpush.msra.mxu0 %v125
    %523 = vmatpush.msra.mxu0 %v124
    %524 = vmatpush.msra.mxu0 %v123
    %525 = vmatpush.msra.mxu0 %v122
    %526 = vmatpush.msra.mxu0 %v121
    %527 = vmatpush.msra.mxu0 %v120
    %528 = vmatpush.msra.mxu0 %v119
    %529 = vmatmul.f32.gmra.mxu0 %v512
    %v530 = vpop.f32.mrf.mxu0
    %v531 = vadd.f32 %v116, %v530
    %532 = vdwg.mxu0
    %v533 = vtanh.pop %v531
    %534 = vmatpush.msra.mxu0 %v134
    %535 = vmatpush.msra.mxu0 %v133
    %536 = vmatpush.msra.mxu0 %v132
    %537 = vmatpush.msra.mxu0 %v131
    %538 = vmatpush.msra.mxu0 %v130
    %539 = vmatpush.msra.mxu0 %v129
    %540 = vmatpush.msra.mxu0 %v128
    %541 = vmatpush.msra.mxu0 %v127
    %542 = vmatpush.msra.mxu0 %v126
    %543 = vmatpush.msra.mxu0 %v125
    %544 = vmatpush.msra.mxu0 %v124
    %545 = vmatpush.msra.mxu0 %v123
    %546 = vmatpush.msra.mxu0 %v122
    %547 = vmatpush.msra.mxu0 %v121
    %548 = vmatpush.msra.mxu0 %v120
    %549 = vmatpush.msra.mxu0 %v119
    %550 = vmatmul.f32.gmra.mxu0 %v533
    %v551 = vpop.f32.mrf.mxu0
    %v552 = vadd.f32 %v116, %v551
    %553 = vdwg.mxu0
    %v554 = vtanh.pop %v552
    %555 = vmatpush.msra.mxu0 %v134
    %556 = vmatpush.msra.mxu0 %v133
    %557 = vmatpush.msra.mxu0 %v132
    %558 = vmatpush.msra.mxu0 %v131
    %559 = vmatpush.msra.mxu0 %v130
    %560 = vmatpush.msra.mxu0 %v129
    %561 = vmatpush.msra.mxu0 %v128
    %562 = vmatpush.msra.mxu0 %v127
    %563 = vmatpush.msra.mxu0 %v126
    %564 = vmatpush.msra.mxu0 %v125
    %565 = vmatpush.msra.mxu0 %v124
    %566 = vmatpush.msra.mxu0 %v123
    %567 = vmatpush.msra.mxu0 %v122
    %568 = vmatpush.msra.mxu0 %v121
    %569 = vmatpush.msra.mxu0 %v120
    %570 = vmatpush.msra.mxu0 %v119
    %571 = vmatmul.f32.gmra.mxu0 %v554
    %v572 = vpop.f32.mrf.mxu0
    %v573 = vadd.f32 %v116, %v572
    %574 = vdwg.mxu0
    %v575 = vtanh.pop %v573
    %576 = vmatpush.msra.mxu0 %v134
    %577 = vmatpush.msra.mxu0 %v133
    %578 = vmatpush.msra.mxu0 %v132
    %579 = vmatpush.msra.mxu0 %v131
    %580 = vmatpush.msra.mxu0 %v130
    %581 = vmatpush.msra.mxu0 %v129
    %582 = vmatpush.msra.mxu0 %v128
    %583 = vmatpush.msra.mxu0 %v127
    %584 = vmatpush.msra.mxu0 %v126
    %585 = vmatpush.msra.mxu0 %v125
    %586 = vmatpush.msra.mxu0 %v124
    %587 = vmatpush.msra.mxu0 %v123
    %588 = vmatpush.msra.mxu0 %v122
    %589 = vmatpush.msra.mxu0 %v121
    %590 = vmatpush.msra.mxu0 %v120
    %591 = vmatpush.msra.mxu0 %v119
    %592 = vmatmul.f32.gmra.mxu0 %v575
    %v593 = vpop.f32.mrf.mxu0
    %v594 = vadd.f32 %v116, %v593
    %595 = vdwg.mxu0
    %v596 = vtanh.pop %v594
    %597 = vmatpush.msra.mxu0 %v134
    %598 = vmatpush.msra.mxu0 %v133
    %599 = vmatpush.msra.mxu0 %v132
    %600 = vmatpush.msra.mxu0 %v131
    %601 = vmatpush.msra.mxu0 %v130
    %602 = vmatpush.msra.mxu0 %v129
    %603 = vmatpush.msra.mxu0 %v128
    %604 = vmatpush.msra.mxu0 %v127
    %605 = vmatpush.msra.mxu0 %v126
    %606 = vmatpush.msra.mxu0 %v125
    %607 = vmatpush.msra.mxu0 %v124
    %608 = vmatpush.msra.mxu0 %v123
    %609 = vmatpush.msra.mxu0 %v122
    %610 = vmatpush.msra.mxu0 %v121
    %611 = vmatpush.msra.mxu0 %v120
    %612 = vmatpush.msra.mxu0 %v119
    %613 = vmatmul.f32.gmra.mxu0 %v596
    %v614 = vpop.f32.mrf.mxu0
    %v615 = vadd.f32 %v116, %v614
    %616 = vdwg.mxu0
    %v617 = vtanh.pop %v615
    %618 = vmatpush.msra.mxu0 %v134
    %619 = vmatpush.msra.mxu0 %v133
    %620 = vmatpush.msra.mxu0 %v132
    %621 = vmatpush.msra.mxu0 %v131
    %622 = vmatpush.msra.mxu0 %v130
    %623 = vmatpush.msra.mxu0 %v129
    %624 = vmatpush.msra.mxu0 %v128
    %625 = vmatpush.msra.mxu0 %v127
    %626 = vmatpush.msra.mxu0 %v126
    %627 = vmatpush.msra.mxu0 %v125
    %628 = vmatpush.msra.mxu0 %v124
    %629 = vmatpush.msra.mxu0 %v123
    %630 = vmatpush.msra.mxu0 %v122
    %631 = vmatpush.msra.mxu0 %v121
    %632 = vmatpush.msra.mxu0 %v120
    %633 = vmatpush.msra.mxu0 %v119
    %634 = vmatmul.f32.gmra.mxu0 %v617
    %v635 = vpop.f32.mrf.mxu0
    %v636 = vadd.f32 %v116, %v635
    %637 = vdwg.mxu0
    %v638 = vtanh.pop %v636
    %639 = vmatpush.msra.mxu0 %v134
    %640 = vmatpush.msra.mxu0 %v133
    %641 = vmatpush.msra.mxu0 %v132
    %642 = vmatpush.msra.mxu0 %v131
    %643 = vmatpush.msra.mxu0 %v130
    %644 = vmatpush.msra.mxu0 %v129
    %645 = vmatpush.msra.mxu0 %v128
    %646 = vmatpush.msra.mxu0 %v127
    %647 = vmatpush.msra.mxu0 %v126
    %648 = vmatpush.msra.mxu0 %v125
    %649 = vmatpush.msra.mxu0 %v124
    %650 = vmatpush.msra.mxu0 %v123
    %651 = vmatpush.msra.mxu0 %v122
    %652 = vmatpush.msra.mxu0 %v121
    %653 = vmatpush.msra.mxu0 %v120
    %654 = vmatpush.msra.mxu0 %v119
    %655 = vmatmul.f32.gmra.mxu0 %v638
    %v656 = vpop.f32.mrf.mxu0
    %v657 = vadd.f32 %v116, %v656
    %658 = vdwg.mxu0
    %v659 = vtanh.pop %v657
    %660 = vmatpush.msra.mxu0 %v134
    %661 = vmatpush.msra.mxu0 %v133
    %662 = vmatpush.msra.mxu0 %v132
    %663 = vmatpush.msra.mxu0 %v131
    %664 = vmatpush.msra.mxu0 %v130
    %665 = vmatpush.msra.mxu0 %v129
    %666 = vmatpush.msra.mxu0 %v128
    %667 = vmatpush.msra.mxu0 %v127
    %668 = vmatpush.msra.mxu0 %v126
    %669 = vmatpush.msra.mxu0 %v125
    %670 = vmatpush.msra.mxu0 %v124
    %671 = vmatpush.msra.mxu0 %v123
    %672 = vmatpush.msra.mxu0 %v122
    %673 = vmatpush.msra.mxu0 %v121
    %674 = vmatpush.msra.mxu0 %v120
    %675 = vmatpush.msra.mxu0 %v119
    %676 = vmatmul.f32.gmra.mxu0 %v659
    %v677 = vpop.f32.mrf.mxu0
    %v678 = vadd.f32 %v116, %v677
    %679 = vdwg.mxu0
    %v680 = vtanh.pop %v678
    %681 = vmatpush.msra.mxu0 %v134
    %682 = vmatpush.msra.mxu0 %v133
    %683 = vmatpush.msra.mxu0 %v132
    %684 = vmatpush.msra.mxu0 %v131
    %685 = vmatpush.msra.mxu0 %v130
    %686 = vmatpush.msra.mxu0 %v129
    %687 = vmatpush.msra.mxu0 %v128
    %688 = vmatpush.msra.mxu0 %v127
    %689 = vmatpush.msra.mxu0 %v126
    %690 = vmatpush.msra.mxu0 %v125
    %691 = vmatpush.msra.mxu0 %v124
    %692 = vmatpush.msra.mxu0 %v123
    %693 = vmatpush.msra.mxu0 %v122
    %694 = vmatpush.msra.mxu0 %v121
    %695 = vmatpush.msra.mxu0 %v120
    %696 = vmatpush.msra.mxu0 %v119
    %697 = vmatmul.f32.gmra.mxu0 %v680
    %v698 = vpop.f32.mrf.mxu0
    %v699 = vadd.f32 %v116, %v698
    %700 = vdwg.mxu0
    %v701 = vtanh.pop %v699
    %702 = vmatpush.msra.mxu0 %v134
    %703 = vmatpush.msra.mxu0 %v133
    %704 = vmatpush.msra.mxu0 %v132
    %705 = vmatpush.msra.mxu0 %v131
    %706 = vmatpush.msra.mxu0 %v130
    %707 = vmatpush.msra.mxu0 %v129
    %708 = vmatpush.msra.mxu0 %v128
    %709 = vmatpush.msra.mxu0 %v127
    %710 = vmatpush.msra.mxu0 %v126
    %711 = vmatpush.msra.mxu0 %v125
    %712 = vmatpush.msra.mxu0 %v124
    %713 = vmatpush.msra.mxu0 %v123
    %714 = vmatpush.msra.mxu0 %v122
    %715 = vmatpush.msra.mxu0 %v121
    %716 = vmatpush.msra.mxu0 %v120
    %717 = vmatpush.msra.mxu0 %v119
    %718 = vmatmul.f32.gmra.mxu0 %v701
    %v719 = vpop.f32.mrf.mxu0
    %v720 = vadd.f32 %v116, %v719
    %721 = vdwg.mxu0
    %v722 = vtanh.pop %v720
    %723 = vmatpush.msra.mxu0 %v134
    %724 = vmatpush.msra.mxu0 %v133
    %725 = vmatpush.msra.mxu0 %v132
    %726 = vmatpush.msra.mxu0 %v131
    %727 = vmatpush.msra.mxu0 %v130
    %728 = vmatpush.msra.mxu0 %v129
    %729 = vmatpush.msra.mxu0 %v128
    %730 = vmatpush.msra.mxu0 %v127
    %731 = vmatpush.msra.mxu0 %v126
    %732 = vmatpush.msra.mxu0 %v125
    %733 = vmatpush.msra.mxu0 %v124
    %734 = vmatpush.msra.mxu0 %v123
    %735 = vmatpush.msra.mxu0 %v122
    %736 = vmatpush.msra.mxu0 %v121
    %737 = vmatpush.msra.mxu0 %v120
    %738 = vmatpush.msra.mxu0 %v119
    %739 = vmatmul.f32.gmra.mxu0 %v722
    %v740 = vpop.f32.mrf.mxu0
    %v741 = vadd.f32 %v116, %v740
    %742 = vdwg.mxu0
    %v743 = vtanh.pop %v741
    %v744 = vld [vmem:[#allocation8] sm:$0xff]
    %v745 = vld [vmem:[#allocation8 + $0x8] sm:$0xff]
    %v746 = vld [vmem:[#allocation8 + $0x10] sm:$0xff]
    %v747 = vld [vmem:[#allocation8 + $0x18] sm:$0xff]
    %v748 = vld [vmem:[#allocation8 + $0x20] sm:$0xff]
    %v749 = vld [vmem:[#allocation8 + $0x28] sm:$0xff]
    %v750 = vld [vmem:[#allocation8 + $0x30] sm:$0xff]
    %v751 = vld [vmem:[#allocation8 + $0x38] sm:$0xff]
    %v752 = vld [vmem:[#allocation8 + $0x40] sm:$0xff]
    %v753 = vld [vmem:[#allocation8 + $0x48] sm:$0xff]
    %v754 = vld [vmem:[#allocation8 + $0x50] sm:$0xff]
    %v755 = vld [vmem:[#allocation8 + $0x58] sm:$0xff]
    %v756 = vld [vmem:[#allocation8 + $0x60] sm:$0xff]
    %v757 = vld [vmem:[#allocation8 + $0x68] sm:$0xff]
    %v758 = vld [vmem:[#allocation8 + $0x70] sm:$0xff]
    %v759 = vld [vmem:[#allocation8 + $0x78] sm:$0xff]
    %v760 = vld [vmem:[%s5] sm:$0x1]
    %v762 = vperm.slane %v760, 0
    %764 = vmatpush.msra.mxu0 %v759
    %765 = vmatpush.msra.mxu0 %v758
    %766 = vmatpush.msra.mxu0 %v757
    %767 = vmatpush.msra.mxu0 %v756
    %768 = vmatpush.msra.mxu0 %v755
    %769 = vmatpush.msra.mxu0 %v754
    %770 = vmatpush.msra.mxu0 %v753
    %771 = vmatpush.msra.mxu0 %v752
    %772 = vmatpush.msra.mxu0 %v751
    %773 = vmatpush.msra.mxu0 %v750
    %774 = vmatpush.msra.mxu0 %v749
    %775 = vmatpush.msra.mxu0 %v748
    %776 = vmatpush.msra.mxu0 %v747
    %777 = vmatpush.msra.mxu0 %v746
    %778 = vmatpush.msra.mxu0 %v745
    %779 = vmatpush.msra.mxu0 %v744
    %780 = vmatmul.f32.gmra.mxu0 %v743
    %v781 = vpop.f32.mrf.mxu0
    %v782 = vadd.f32 %v762, %v781
    %783 = vdwg.mxu0
    %784 = vst [vmem:[#allocation10] sm:$0xff] %v782
    // Predicated region
    $region42: #{tpu_custom_call.1} parent=1 // pred_check
      _
    $region43: #{tpu_custom_call.1} parent=1 // pred_check_branch
      %786 = sbr.rel (0) target = $region45
    $region44: #{tpu_custom_call.1} parent=1 // pred_region
      %788 = vsyncadd [#allocation4], 0
      %s790 = sshll.u32 [#allocation10], 4
      %s791 = int_to_ptr.vmem [resolvable:$true] %s790
      %s792 = sshll.u32 %s6, 4
      %s793 = int_to_ptr.hbm [resolvable:$true] %s792
      %795 = dma.vmem_to_hbm [thread:$0]  %s791, 128, %s793, [#allocation4]
    $region45: #{tpu_custom_call.1} parent=1 // pred_fallthru
      _
    // Predicated region
    $region46: #{tpu_custom_call.1} parent=1 // pred_check
      _
    $region47: #{tpu_custom_call.1} parent=1 // pred_check_branch
      %797 = sbr.rel (0) target = $region49
    $region48: #{tpu_custom_call.1} parent=1 // pred_region
      %799 = dma.done [#allocation4], 128
    $region49: #{tpu_custom_call.1} parent=1 // pred_fallthru
      _
    %800 = vsyncpa [#allocation3], 1
    %801 = vsyncpa [#allocation6], 1
    %802 = vsyncpa [#allocation9], 1
    %803 = vsyncpa [#allocation4], 1

</llo_original>
